<compile_context>
chip_gen: v7x
topology: tpu7x:2x2x1
jax: 0.10.0
libtpu: 0.0.40
codegen_flags: <defaults>
</compile_context>

<pallas_src>
import functools

import jax
import jax.numpy as jnp
from jax import lax
from jax.experimental import pallas as pl
from jax.experimental.pallas import tpu as pltpu

EPS = 1e-5


def _round_up(x, m):
    return ((x + m - 1) // m) * m


def _dropout(attn_f32, bits_u32, p):
    # Inverted dropout: drop iff bits < p * 2^32 (trace-time threshold),
    # keep-scale folded into a single select+mul.
    threshold = jnp.uint32(min(int(round(p * (2.0 ** 32))), 2 ** 32 - 1))
    scale = jnp.float32(1.0 / (1.0 - p))
    keep = bits_u32 >= threshold
    return attn_f32 * jnp.where(keep, scale, jnp.float32(0.0))


def _residual_layernorm(emb_ref, attn_f32, gamma_ref, beta_ref, out_ref):
    # x = emb + dropped(attn); LayerNorm over the last dim.
    x = emb_ref[...].astype(jnp.float32) + attn_f32
    d = x.shape[-1]
    inv_d = jnp.float32(1.0 / d)
    # Single-pass mean/var (one full-tile temporary fewer than two-pass);
    # clamp var >= 0 against cancellation.
    s1 = jnp.sum(x, axis=-1, keepdims=True)
    s2 = jnp.sum(x * x, axis=-1, keepdims=True)
    mean = s1 * inv_d
    var = jnp.maximum(s2 * inv_d - mean * mean, 0.0)
    inv_std = lax.rsqrt(var + jnp.float32(EPS))
    gamma = gamma_ref[...].astype(jnp.float32)
    beta = beta_ref[...].astype(jnp.float32)
    out_ref[...] = ((x - mean) * inv_std * gamma + beta).astype(out_ref.dtype)


def _kernel_hw_dropout(seed_ref, emb_ref, attn_ref, gamma_ref, beta_ref,
                       out_ref, *, p):
    # Per-tile reseed keeps results deterministic and core-independent, so
    # the grid axis can be "parallel" (v7x megacore).
    pltpu.prng_seed(seed_ref[0] + pl.program_id(0))
    bits = pltpu.prng_random_bits(attn_ref.shape)
    if bits.dtype != jnp.uint32:
        bits = pltpu.bitcast(bits, jnp.uint32)
    attn = _dropout(attn_ref[...].astype(jnp.float32), bits, p)
    _residual_layernorm(emb_ref, attn, gamma_ref, beta_ref, out_ref)


def _kernel_bits_dropout(seed_ref, emb_ref, attn_ref, bits_ref, gamma_ref,
                         beta_ref, out_ref, *, p):
    # Portable path (CPU / interpret): random bits streamed in as an input.
    del seed_ref
    attn = _dropout(attn_ref[...].astype(jnp.float32), bits_ref[...], p)
    _residual_layernorm(emb_ref, attn, gamma_ref, beta_ref, out_ref)


def _kernel_no_dropout(seed_ref, emb_ref, attn_ref, gamma_ref, beta_ref,
                       out_ref):
    del seed_ref
    _residual_layernorm(emb_ref, attn_ref[...].astype(jnp.float32),
                        gamma_ref, beta_ref, out_ref)


def _pick_tile_rows(rows, d_model):
    # Memory-bound kernel: aim for ~1.5 MiB of f32 data per input tile so the
    # ~0.35us per-grid-step overhead is amortized (>85% of HBM roofline),
    # while keeping total double-buffered VMEM (~5x tile bytes) well under
    # v5e's 16 MiB default and v7x's 64 MiB physical VMEM.
    target_bytes = 1536 * 1024
    t = target_bytes // max(1, d_model * 4)
    t = max(8, min(1024, (t // 8) * 8))
    t = min(t, max(8, _round_up(rows, 8)))
    return _round_up(t, 8)


def post_processing(emb, attn, gamma, beta, *, p=0.1, seed=0,
                    deterministic=False, tile_rows=None, rng_key=None):
    """emb, attn: (B, S, D); gamma, beta: (D,). Returns (B, S, D)."""
    B, S, D = emb.shape
    rows = B * S
    apply_dropout = (not deterministic) and p > 0.0

    # NOTE: for production d_model use a multiple of 128 so output stores are
    # lane-dense; smaller D (like the toy case below) still works, but lanes
    # are partially idle.
    if tile_rows is None:
        tile_rows = _pick_tile_rows(rows, D)
    tile_rows = max(8, min(_round_up(tile_rows, 8), _round_up(rows, 8)))

    rows_padded = _round_up(rows, tile_rows)
    grid = (rows_padded // tile_rows,)

    def pad_rows(x):
        if rows_padded == rows:
            return x
        return jnp.pad(x, ((0, rows_padded - rows), (0, 0)))

    emb2 = pad_rows(emb.reshape(rows, D))
    attn2 = pad_rows(attn.reshape(rows, D))
    gamma2 = gamma.reshape(1, D)
    beta2 = beta.reshape(1, D)
    seed_arr = jnp.array([seed], dtype=jnp.int32)

    row_spec = pl.BlockSpec((tile_rows, D), lambda i, seed: (i, 0))
    vec_spec = pl.BlockSpec((1, D), lambda i, seed: (0, 0))

    use_hw_prng = jax.default_backend() == "tpu"

    if not apply_dropout:
        kernel = _kernel_no_dropout
        inputs = (seed_arr, emb2, attn2, gamma2, beta2)
        in_specs = [row_spec, row_spec, vec_spec, vec_spec]
    elif use_hw_prng:
        kernel = functools.partial(_kernel_hw_dropout, p=float(p))
        inputs = (seed_arr, emb2, attn2, gamma2, beta2)
        in_specs = [row_spec, row_spec, vec_spec, vec_spec]
    else:
        # TPU on-chip PRNG does not lower on CPU/interpret: generate the raw
        # bits with jax.random outside and pass them through the pipeline.
        if rng_key is None:
            rng_key = jax.random.PRNGKey(seed)
        bits = jax.random.bits(rng_key, (rows, D), dtype=jnp.uint32)
        bits = pad_rows(bits)
        kernel = functools.partial(_kernel_bits_dropout, p=float(p))
        inputs = (seed_arr, emb2, attn2, bits, gamma2, beta2)
        in_specs = [row_spec, row_spec, row_spec, vec_spec, vec_spec]

    out = pl.pallas_call(
        kernel,
        out_shape=jax.ShapeDtypeStruct((rows_padded, D), emb.dtype),
        grid_spec=pltpu.PrefetchScalarGridSpec(
            num_scalar_prefetch=1,
            grid=grid,
            in_specs=in_specs,
            out_specs=row_spec,
        ),
        compiler_params=pltpu.CompilerParams(
            # Per-tile PRNG reseed -> grid steps are independent; "parallel"
            # lets v7x shard the row axis across both TensorCores.
            dimension_semantics=("parallel",),
            vmem_limit_bytes=32 * 1024 * 1024,
        ),
    )(*inputs)

    if rows_padded != rows:
        out = out[:rows]
    return out.reshape(B, S, D)


if __name__ == "__main__":
    # Small shapes implied by the module: (batch, seq, d_model)
    B, S, D = 2, 8, 32
    key = jax.random.PRNGKey(0)
    k_emb, k_attn = jax.random.split(key)
    emb = jax.random.normal(k_emb, (B, S, D), dtype=jnp.float32)
    attn = jax.random.normal(k_attn, (B, S, D), dtype=jnp.float32)

    # nn.LayerNorm(d_model) default init: weight=1, bias=0.
    gamma = jnp.ones((D,), dtype=jnp.float32)
    beta = jnp.zeros((D,), dtype=jnp.float32)

    # Training-mode path (dropout active).
    out_train = post_processing(emb, attn, gamma, beta, p=0.1, seed=1234,
                                deterministic=False)
    jax.block_until_ready(out_train)
    assert bool(jnp.all(jnp.isfinite(out_train)))

    # Eval-mode (dropout = identity) vs plain-JAX reference.
    out_eval = post_processing(emb, attn, gamma, beta, p=0.1,
                               deterministic=True)
    jax.block_until_ready(out_eval)
    x = emb + attn
    mean = jnp.mean(x, axis=-1, keepdims=True)
    var = jnp.mean((x - mean) ** 2, axis=-1, keepdims=True)
    ref = (x - mean) * lax.rsqrt(var + EPS) * gamma + beta
    assert jnp.allclose(out_eval, ref, atol=1e-4, rtol=1e-4)

    print("KERNEL_OK")
</pallas_src>

<mosaic_0001>
module attributes {stable_mosaic.version = 11 : i64} {
  func.func @_kernel_bits_dropout(%arg0: i32, %arg1: memref<1xi32, #tpu.memory_space<smem>>, %arg2: memref<16x32xf32, #tpu.memory_space<vmem>>, %arg3: memref<16x32xf32, #tpu.memory_space<vmem>>, %arg4: memref<16x32xi32, #tpu.memory_space<vmem>>, %arg5: memref<1x32xf32, #tpu.memory_space<vmem>>, %arg6: memref<1x32xf32, #tpu.memory_space<vmem>>, %arg7: memref<16x32xf32, #tpu.memory_space<vmem>>) attributes {dimension_semantics = [#tpu.dimension_semantics<parallel>], iteration_bounds = array<i64: 1>, scalar_prefetch = 1 : i64, scratch_operands = 0 : i64, tpu.core_type = #tpu.core_type<tc>, window_params = [{transform_indices = @transform_0, window_bounds = array<i64: 16, 32>}, {transform_indices = @transform_1, window_bounds = array<i64: 16, 32>}, {transform_indices = @transform_2, window_bounds = array<i64: 16, 32>}, {pipeline_mode = #tpu.pipeline_mode<synchronous>, transform_indices = @transform_3, window_bounds = array<i64: 1, 32>}, {pipeline_mode = #tpu.pipeline_mode<synchronous>, transform_indices = @transform_4, window_bounds = array<i64: 1, 32>}, {transform_indices = @transform_5, window_bounds = array<i64: 16, 32>}]} {
    %c0 = arith.constant 0 : index
    %c0_0 = arith.constant 0 : index
    %0 = vector.load %arg3[%c0, %c0_0] : memref<16x32xf32, #tpu.memory_space<vmem>>, vector<16x32xf32>
    %c0_1 = arith.constant 0 : index
    %c0_2 = arith.constant 0 : index
    %1 = vector.load %arg4[%c0_1, %c0_2] : memref<16x32xi32, #tpu.memory_space<vmem>>, vector<16x32xi32>
    %c429496730_i32 = arith.constant 429496730 : i32
    %2 = vector.broadcast %c429496730_i32 : i32 to vector<16x32xi32>
    %3 = arith.cmpi uge, %1, %2 : vector<16x32xi32>
    %cst = arith.constant 1.11111116 : f32
    %cst_3 = arith.constant 0.000000e+00 : f32
    %4 = vector.broadcast %cst : f32 to vector<16x32xf32>
    %5 = vector.broadcast %cst_3 : f32 to vector<16x32xf32>
    %6 = arith.select %3, %4, %5 : vector<16x32xi1>, vector<16x32xf32>
    %7 = arith.mulf %0, %6 : vector<16x32xf32>
    %c0_4 = arith.constant 0 : index
    %c0_5 = arith.constant 0 : index
    %8 = vector.load %arg2[%c0_4, %c0_5] : memref<16x32xf32, #tpu.memory_space<vmem>>, vector<16x32xf32>
    %9 = arith.addf %8, %7 : vector<16x32xf32>
    %cst_6 = arith.constant dense<0.000000e+00> : vector<16xf32>
    %10 = vector.multi_reduction <add>, %9, %cst_6 [1] : vector<16x32xf32> to vector<16xf32>
    %11 = vector.shape_cast %10 : vector<16xf32> to vector<16x1xf32>
    %12 = arith.mulf %9, %9 : vector<16x32xf32>
    %cst_7 = arith.constant dense<0.000000e+00> : vector<16xf32>
    %13 = vector.multi_reduction <add>, %12, %cst_7 [1] : vector<16x32xf32> to vector<16xf32>
    %14 = vector.shape_cast %13 : vector<16xf32> to vector<16x1xf32>
    %cst_8 = arith.constant 3.125000e-02 : f32
    %15 = vector.broadcast %cst_8 : f32 to vector<16x1xf32>
    %16 = arith.mulf %11, %15 : vector<16x1xf32>
    %cst_9 = arith.constant 3.125000e-02 : f32
    %17 = vector.broadcast %cst_9 : f32 to vector<16x1xf32>
    %18 = arith.mulf %14, %17 : vector<16x1xf32>
    %19 = arith.mulf %16, %16 : vector<16x1xf32>
    %20 = arith.subf %18, %19 : vector<16x1xf32>
    %cst_10 = arith.constant 0.000000e+00 : f32
    %21 = vector.broadcast %cst_10 : f32 to vector<16x1xf32>
    %22 = arith.maximumf %20, %21 : vector<16x1xf32>
    %cst_11 = arith.constant 9.99999974E-6 : f32
    %23 = vector.broadcast %cst_11 : f32 to vector<16x1xf32>
    %24 = arith.addf %22, %23 : vector<16x1xf32>
    %25 = math.rsqrt %24 : vector<16x1xf32>
    %c0_12 = arith.constant 0 : index
    %c0_13 = arith.constant 0 : index
    %26 = vector.load %arg5[%c0_12, %c0_13] : memref<1x32xf32, #tpu.memory_space<vmem>>, vector<1x32xf32>
    %c0_14 = arith.constant 0 : index
    %c0_15 = arith.constant 0 : index
    %27 = vector.load %arg6[%c0_14, %c0_15] : memref<1x32xf32, #tpu.memory_space<vmem>>, vector<1x32xf32>
    %28 = vector.broadcast %16 : vector<16x1xf32> to vector<16x32xf32>
    %29 = arith.subf %9, %28 : vector<16x32xf32>
    %30 = vector.broadcast %25 : vector<16x1xf32> to vector<16x32xf32>
    %31 = arith.mulf %29, %30 : vector<16x32xf32>
    %32 = vector.broadcast %26 : vector<1x32xf32> to vector<16x32xf32>
    %33 = arith.mulf %31, %32 : vector<16x32xf32>
    %34 = vector.broadcast %27 : vector<1x32xf32> to vector<16x32xf32>
    %35 = arith.addf %33, %34 : vector<16x32xf32>
    %c0_16 = arith.constant 0 : index
    %c0_17 = arith.constant 0 : index
    %36 = vector.load %arg7[%c0_16, %c0_17] : memref<16x32xf32, #tpu.memory_space<vmem>>, vector<16x32xf32>
    tpu.vector_store %arg7[%c0_16, %c0_17], %35 {strides = array<i32>} : memref<16x32xf32, #tpu.memory_space<vmem>>, vector<16x32xf32>,
    return
  }
  func.func @transform_0(%arg0: i32, %arg1: memref<1xi32, #tpu.memory_space<smem>>) -> (i32, i32) {
    %c0_i32 = arith.constant 0 : i32
    %c0_i32_0 = arith.constant 0 : i32
    return %arg0, %c0_i32 : i32, i32
  }
  func.func @transform_1(%arg0: i32, %arg1: memref<1xi32, #tpu.memory_space<smem>>) -> (i32, i32) {
    %c0_i32 = arith.constant 0 : i32
    %c0_i32_0 = arith.constant 0 : i32
    return %arg0, %c0_i32 : i32, i32
  }
  func.func @transform_2(%arg0: i32, %arg1: memref<1xi32, #tpu.memory_space<smem>>) -> (i32, i32) {
    %c0_i32 = arith.constant 0 : i32
    %c0_i32_0 = arith.constant 0 : i32
    return %arg0, %c0_i32 : i32, i32
  }
  func.func @transform_3(%arg0: i32, %arg1: memref<1xi32, #tpu.memory_space<smem>>) -> (i32, i32) {
    %c0_i32 = arith.constant 0 : i32
    %c0_i32_0 = arith.constant 0 : i32
    %c0_i32_1 = arith.constant 0 : i32
    return %c0_i32, %c0_i32_0 : i32, i32
  }
  func.func @transform_4(%arg0: i32, %arg1: memref<1xi32, #tpu.memory_space<smem>>) -> (i32, i32) {
    %c0_i32 = arith.constant 0 : i32
    %c0_i32_0 = arith.constant 0 : i32
    %c0_i32_1 = arith.constant 0 : i32
    return %c0_i32, %c0_i32_0 : i32, i32
  }
  func.func @transform_5(%arg0: i32, %arg1: memref<1xi32, #tpu.memory_space<smem>>) -> (i32, i32) {
    %c0_i32 = arith.constant 0 : i32
    %c0_i32_0 = arith.constant 0 : i32
    return %arg0, %c0_i32 : i32, i32
  }
}

</mosaic_0001>

<llo_original>
// kernel: tpu_custom_call.1
$region0: #{tpu_custom_call.1}
  #allocation0 [shape = 'u32[]', space=smem, size = 0x4, offset = 0x4, fixed_abs, tag = 'smem constant byte address 0x4 - core index']
  #allocation1 [shape = 'u32[144,128]{1,0:T(1,128)}', space=vmem, size = 0x12000, scoped, tag = 'internal scratch']
  #allocation2 [shape = 's32[1]{0}', space=sflag, size = 0x4, scoped, tag = 'scoped memory for tpu_custom_call.1']
  #allocation3 [shape = 's32[1]{0:T(128)S(6)}', space=smem, size = 0x200, scoped, tag = 'prefetched SMEM operand 0']
  %s0 = inlined_call_operand.<no memory space> [shape: s32[1], index: 0, kind: input, shape index: {}]
  %s1 = inlined_call_operand.hbm [shape: f32[16,32], index: 1, kind: input, shape index: {}]
  %s2 = inlined_call_operand.hbm [shape: f32[16,32], index: 2, kind: input, shape index: {}]
  %s3 = inlined_call_operand.hbm [shape: u32[16,32], index: 3, kind: input, shape index: {}]
  %s4 = inlined_call_operand.vmem [shape: f32[1,32], index: 4, kind: input, shape index: {}]
  %s5 = inlined_call_operand.vmem [shape: f32[1,32], index: 5, kind: input, shape index: {}]
  %s6 = inlined_call_operand.hbm [shape: f32[16,32], index: 6, kind: output, shape index: {}]
  %s7 = sld [smem:[#allocation0]]
  $region42: #{tpu_custom_call.1} parent=0
    _
  %s9 = ssub.s32 1, %s7
  %s10 = scalar_select 0, %s9, %s7
  %11 = sst [smem:[#allocation3]] %s0
  $region1: #{tpu_custom_call.1} parent=0
    #allocation4 [shape = 'u8[8192]{0}', space=vmem, size = 0x2000, scoped, tag = 'input window, operand 1, single buffered']
    #allocation5 [shape = 's32[1]{0}', space=sflag, size = 0x4, scoped, tag = 'scoped memory for tpu_custom_call.1']
    #allocation6 [shape = 's32[1]{0}', space=sflag, size = 0x4, scoped, tag = 'scoped memory for tpu_custom_call.1']
    #allocation7 [shape = 'u8[8192]{0}', space=vmem, size = 0x2000, scoped, tag = 'input window, operand 2, single buffered']
    #allocation8 [shape = 's32[1]{0}', space=sflag, size = 0x4, scoped, tag = 'scoped memory for tpu_custom_call.1']
    #allocation9 [shape = 'u8[8192]{0}', space=vmem, size = 0x2000, scoped, tag = 'input window, operand 3, single buffered']
    #allocation10 [shape = 'u8[8192]{0}', space=vmem, size = 0x2000, scoped, tag = 'output window, operand 0, single buffered']
    %12 = vsyncpa [#allocation5], 0
    %13 = vsyncpa [#allocation8], 0
    %14 = vsyncpa [#allocation6], 0
    // Predicated region
    $region2: #{tpu_custom_call.1} parent=1 // pred_check
      _
    $region3: #{tpu_custom_call.1} parent=1 // pred_check_branch
      %16 = sbr.rel (0) target = $region5
    $region4: #{tpu_custom_call.1} parent=1 // pred_region
      %s18 = ssub.s32 256, 256
      %19 = vsyncadd [#allocation5], %s18
      %s20 = sshll.u32 [#allocation4], 4
      %s21 = int_to_ptr.vmem [resolvable:$true] %s20
      %26 = dma.hbm_to_vmem [thread:$0]  %s1, 256, %s21, [#allocation5], 128, 128, 8
    $region5: #{tpu_custom_call.1} parent=1 // pred_fallthru
      _
    // Predicated region
    $region6: #{tpu_custom_call.1} parent=1 // pred_check
      _
    $region7: #{tpu_custom_call.1} parent=1 // pred_check_branch
      %28 = sbr.rel (0) target = $region9
    $region8: #{tpu_custom_call.1} parent=1 // pred_region
      %s30 = ssub.s32 256, 256
      %31 = vsyncadd [#allocation8], %s30
      %s32 = sshll.u32 [#allocation7], 4
      %s33 = int_to_ptr.vmem [resolvable:$true] %s32
      %38 = dma.hbm_to_vmem [thread:$0]  %s2, 256, %s33, [#allocation8], 128, 128, 8
    $region9: #{tpu_custom_call.1} parent=1 // pred_fallthru
      _
    // Predicated region
    $region10: #{tpu_custom_call.1} parent=1 // pred_check
      _
    $region11: #{tpu_custom_call.1} parent=1 // pred_check_branch
      %40 = sbr.rel (0) target = $region13
    $region12: #{tpu_custom_call.1} parent=1 // pred_region
      %s42 = ssub.s32 256, 256
      %43 = vsyncadd [#allocation8], %s42
      %s44 = sshll.u32 [#allocation9], 4
      %s45 = int_to_ptr.vmem [resolvable:$true] %s44
      %50 = dma.hbm_to_vmem [thread:$0]  %s3, 256, %s45, [#allocation8], 128, 128, 8
    $region13: #{tpu_custom_call.1} parent=1 // pred_fallthru
      _
    // Predicated region
    $region14: #{tpu_custom_call.1} parent=1 // pred_check
      _
    $region15: #{tpu_custom_call.1} parent=1 // pred_check_branch
      %52 = sbr.rel (0) target = $region17
    $region16: #{tpu_custom_call.1} parent=1 // pred_region
      _
    $region17: #{tpu_custom_call.1} parent=1 // pred_fallthru
      _
    // Predicated region
    $region18: #{tpu_custom_call.1} parent=1 // pred_check
      _
    $region19: #{tpu_custom_call.1} parent=1 // pred_check_branch
      %54 = sbr.rel (0) target = $region21
    $region20: #{tpu_custom_call.1} parent=1 // pred_region
      _
    $region21: #{tpu_custom_call.1} parent=1 // pred_fallthru
      _
    // Predicated region
    $region22: #{tpu_custom_call.1} parent=1 // pred_check
      _
    $region23: #{tpu_custom_call.1} parent=1 // pred_check_branch
      %56 = sbr.rel (0) target = $region25
    $region24: #{tpu_custom_call.1} parent=1 // pred_region
      %57 = dma.done [#allocation5], 256
    $region25: #{tpu_custom_call.1} parent=1 // pred_fallthru
      _
    // Predicated region
    $region26: #{tpu_custom_call.1} parent=1 // pred_check
      _
    $region27: #{tpu_custom_call.1} parent=1 // pred_check_branch
      %59 = sbr.rel (0) target = $region29
    $region28: #{tpu_custom_call.1} parent=1 // pred_region
      %60 = dma.done [#allocation8], 256
    $region29: #{tpu_custom_call.1} parent=1 // pred_fallthru
      _
    // Predicated region
    $region30: #{tpu_custom_call.1} parent=1 // pred_check
      _
    $region31: #{tpu_custom_call.1} parent=1 // pred_check_branch
      %62 = sbr.rel (0) target = $region33
    $region32: #{tpu_custom_call.1} parent=1 // pred_region
      %63 = dma.done [#allocation8], 256
    $region33: #{tpu_custom_call.1} parent=1 // pred_fallthru
      _
    %v64 = vld [vmem:[#allocation7] sm:$0xff]
    %v65 = vld [vmem:[#allocation7 + $0x8] sm:$0xff]
    %v66 = vld [vmem:[#allocation9] sm:$0xff]
    %v67 = vld [vmem:[#allocation9 + $0x8] sm:$0xff]
    %vm68 = vcmp.ge.u32.totalorder %v66, 429496730
    %vm69 = vcmp.ge.u32.totalorder %v67, 429496730
    %v70 = vsel %vm68, 1.1111112, 0.0
    %v71 = vsel %vm69, 1.1111112, 0.0
    %v72 = vmul.f32 %v64, %v70
    %v73 = vmul.f32 %v65, %v71
    %v74 = vld [vmem:[#allocation4] sm:$0xff]
    %v75 = vld [vmem:[#allocation4 + $0x8] sm:$0xff]
    %v76 = vadd.f32 %v74, %v72
    %v77 = vadd.f32 %v75, %v73
    %vm78 = vcmask 261120
    %v79 = vsel %vm78, %v76, 0.0
    %80 = vadd.xlane.f32.xlu0 %v79
    %v81 = vpop.xlane.xlu0 %80
    %v82 = vsel %vm78, %v77, 0.0
    %83 = vadd.xlane.f32.xlu0 %v82
    %v84 = vpop.xlane.xlu0 %83
    %v85 = vmul.f32 %v76, %v76
    %v86 = vmul.f32 %v77, %v77
    %v87 = vsel %vm78, %v85, 0.0
    %88 = vadd.xlane.f32.xlu0 %v87
    %v89 = vpop.xlane.xlu0 %88
    %v90 = vsel %vm78, %v86, 0.0
    %91 = vadd.xlane.f32.xlu0 %v90
    %v92 = vpop.xlane.xlu0 %91
    %v93 = vmul.f32 %v81, 0.03125
    %v94 = vmul.f32 %v84, 0.03125
    %v95 = vmul.f32 %v89, 0.03125
    %v96 = vmul.f32 %v92, 0.03125
    %v97 = vmul.f32 %v93, %v93
    %v98 = vmul.f32 %v94, %v94
    %v99 = vsub.f32 %v95, %v97
    %v100 = vsub.f32 %v96, %v98
    %v101 = vmax.f32 %v99, 0.0
    %v102 = vmax.f32 %v100, 0.0
    %v103 = vadd.f32 %v101, 1e-05
    %v104 = vadd.f32 %v102, 1e-05
    %v105 = vrsqrt.pop %v103
    %v106 = vrsqrt.pop %v104
    %v107 = vld [vmem:[%s4] sm:$0x1]
    %v108 = vld [vmem:[%s5] sm:$0x1]
    %v109 = vsub.f32 %v76, %v93
    %v110 = vsub.f32 %v77, %v94
    %v111 = vmul.f32 %v109, %v105
    %v112 = vmul.f32 %v110, %v106
    %v114 = vlaneseq
    %v115 = vshrl.u32 %v114, 7
    %v116 = vsub.s32 0, %v115
    %v117 = vrot.slane %v107, %v116
    %v119 = vmul.f32 %v111, %v117
    %v120 = vmul.f32 %v112, %v117
    %v122 = vlaneseq
    %v123 = vshrl.u32 %v122, 7
    %v124 = vsub.s32 0, %v123
    %v125 = vrot.slane %v108, %v124
    %v127 = vadd.f32 %v119, %v125
    %v128 = vadd.f32 %v120, %v125
    %129 = vst.msk [vmem:[#allocation10] sm:$0xff] %vm78, %v127
    %130 = vst.msk [vmem:[#allocation10 + $0x8] sm:$0xff] %vm78, %v128
    // Predicated region
    $region34: #{tpu_custom_call.1} parent=1 // pred_check
      _
    $region35: #{tpu_custom_call.1} parent=1 // pred_check_branch
      %132 = sbr.rel (0) target = $region37
    $region36: #{tpu_custom_call.1} parent=1 // pred_region
      %s134 = ssub.s32 256, 256
      %135 = vsyncadd [#allocation6], %s134
      %s136 = sshll.u32 [#allocation10], 4
      %s137 = int_to_ptr.vmem [resolvable:$true] %s136
      %142 = dma.vmem_to_hbm [thread:$0]  %s137, 256, %s6, [#allocation6], 128, 128, 8
    $region37: #{tpu_custom_call.1} parent=1 // pred_fallthru
      _
    // Predicated region
    $region38: #{tpu_custom_call.1} parent=1 // pred_check
      _
    $region39: #{tpu_custom_call.1} parent=1 // pred_check_branch
      %144 = sbr.rel (0) target = $region41
    $region40: #{tpu_custom_call.1} parent=1 // pred_region
      %145 = dma.done [#allocation6], 256
    $region41: #{tpu_custom_call.1} parent=1 // pred_fallthru
      _
    %146 = vsyncpa [#allocation5], 1
    %147 = vsyncpa [#allocation8], 1
    %148 = vsyncpa [#allocation6], 1

</llo_original>
